<compile_context>
chip_gen: v7x
topology: tpu7x:2x2x1
jax: 0.10.0
libtpu: 0.0.40
codegen_flags: <defaults>
</compile_context>

<pallas_src>
import jax
import jax.numpy as jnp
from jax.experimental import pallas as pl
from jax.experimental.pallas import tpu as pltpu


def _softq_kernel(x_ref, a_ref, w1x_ref, w1a_ref, b1_ref, w2_ref, b2_ref,
                  w3_ref, b3_ref, o_ref):
    # Layer 1: fused "concat" — two bf16 MXU dots over the split W1, f32 acc.
    h1 = jnp.dot(x_ref[...].astype(jnp.bfloat16), w1x_ref[...],
                 preferred_element_type=jnp.float32)
    h1 = h1 + jnp.dot(a_ref[...].astype(jnp.bfloat16), w1a_ref[...],
                      preferred_element_type=jnp.float32)
    h1 = jnp.maximum(h1 + b1_ref[...], 0.0)                      # f32
    # Layer 2: [tb,256] x [256,256] bf16 MXU dot, f32 accumulation.
    h2 = jnp.dot(h1.astype(jnp.bfloat16), w2_ref[...],
                 preferred_element_type=jnp.float32)
    h2 = jnp.maximum(h2 + b2_ref[...], 0.0)                      # f32
    # Layer 3 (out_features=1): contract w3 [1,256] with h2 [tb,256] on the
    # feature axis so the result is already a lane-dense (1, tb) row — no
    # masked column stores.  b3 is a scalar read from SMEM.
    q = jax.lax.dot_general(w3_ref[...], h2,
                            dimension_numbers=(((1,), (1,)), ((), ())),
                            preferred_element_type=jnp.float32)
    o_ref[...] = (q + b3_ref[0, 0]).astype(o_ref.dtype)


def _round_up(n, m):
    return -(-n // m) * m


def _choose_tb(batch, tb_max):
    if batch < 256:
        return batch  # single grid step; too small to split across cores
    # Guarantee >= 2 grid steps so the "parallel" batch axis can shard across
    # v7x's two TensorCores; keep tiles 128-aligned (sublane/lane dense).
    return min(tb_max, _round_up(pl.cdiv(batch, 2), 128))


def soft_q_forward(x, a, params, *, tb_max=2048):
    """x: [B, obs_dim], a: [B, act_dim] -> q: [B, 1]"""
    w1x, w1a, b1, w2, b2, w3, b3 = params
    x = x.astype(jnp.float32)
    a = a.astype(jnp.float32)
    B, obs_dim = x.shape
    act_dim = a.shape[1]
    H = w2.shape[0]

    tb = _choose_tb(B, tb_max)
    num_tiles = pl.cdiv(B, tb)

    def act_spec(d):  # batch-tiled activations (no wrapper-side padding)
        return pl.BlockSpec((tb, d), lambda i: (i, 0))

    def fixed(shape):  # VMEM-resident weights/biases (same block every step)
        return pl.BlockSpec(shape, lambda i: (0, 0))

    q_rows = pl.pallas_call(
        _softq_kernel,
        out_shape=jax.ShapeDtypeStruct((num_tiles, tb), jnp.float32),
        grid=(num_tiles,),
        in_specs=[
            act_spec(obs_dim),                                   # x
            act_spec(act_dim),                                   # a
            fixed((obs_dim, H)),                                 # w1x (bf16)
            fixed((act_dim, H)),                                 # w1a (bf16)
            fixed((1, H)),                                       # b1  (f32)
            fixed((H, H)),                                       # w2  (bf16)
            fixed((1, H)),                                       # b2  (f32)
            fixed((1, H)),                                       # w3 row (f32)
            pl.BlockSpec(memory_space=pltpu.MemorySpace.SMEM),   # b3 scalar
        ],
        out_specs=pl.BlockSpec((1, tb), lambda i: (i, 0)),
        compiler_params=pltpu.CompilerParams(
            dimension_semantics=("parallel",),
            vmem_limit_bytes=32 * 1024 * 1024,
        ),
    )(x, a, w1x, w1a, b1, w2, b2, w3, b3)

    q = q_rows.reshape(num_tiles * tb, 1)
    return q if num_tiles * tb == B else q[:B]


def init_params(key, obs_dim, act_dim, hidden=256):
    """Deterministic init mirroring torch.nn.Linear's uniform(-1/sqrt(fan_in), ...).

    Weights are stored as [in, out] (transpose of PyTorch's [out, in]); W1 is
    split into an x-block and an a-block so the kernel fuses the torch.cat;
    matmul weights (w1x, w1a, w2) are stored bf16 for the MXU (accumulation
    stays f32 in-kernel); biases and the w3 [1, hidden] row stay f32; b3 is a
    [1, 1] SMEM scalar."""
    def linear(key, fan_in, fan_out):
        kw, kb = jax.random.split(key)
        bound = 1.0 / jnp.sqrt(fan_in)
        w = jax.random.uniform(kw, (fan_in, fan_out), jnp.float32, -bound, bound)
        b = jax.random.uniform(kb, (1, fan_out), jnp.float32, -bound, bound)
        return w, b

    k1, k2, k3 = jax.random.split(key, 3)
    w1, b1 = linear(k1, obs_dim + act_dim, hidden)
    w2, b2 = linear(k2, hidden, hidden)
    w3, b3 = linear(k3, hidden, 1)
    w1x = w1[:obs_dim].astype(jnp.bfloat16)
    w1a = w1[obs_dim:].astype(jnp.bfloat16)
    return (w1x, w1a, b1, w2.astype(jnp.bfloat16), b2, w3.T, b3)


def _reference(x, a, params):
    # Pure-JAX reference mirroring the kernel's bf16-operand / f32-accumulate
    # math (same casts), so comparison tolerance stays tight.
    w1x, w1a, b1, w2, b2, w3_row, b3 = params
    h1 = (jnp.dot(x.astype(jnp.bfloat16), w1x, preferred_element_type=jnp.float32)
          + jnp.dot(a.astype(jnp.bfloat16), w1a, preferred_element_type=jnp.float32))
    h1 = jnp.maximum(h1 + b1, 0.0)
    h2 = jnp.dot(h1.astype(jnp.bfloat16), w2, preferred_element_type=jnp.float32)
    h2 = jnp.maximum(h2 + b2, 0.0)
    return h2 @ w3_row.T.astype(jnp.float32) + b3


if __name__ == "__main__":
    key = jax.random.PRNGKey(0)
    kx, ka, kp = jax.random.split(key, 3)

    # Small shapes: batch=2, obs_dim=16, act_dim=8 (single grid step).
    B, obs_dim, act_dim = 2, 16, 8
    x = jax.random.normal(kx, (B, obs_dim), jnp.float32)
    a = jax.random.normal(ka, (B, act_dim), jnp.float32)
    params = init_params(kp, obs_dim, act_dim)

    q = soft_q_forward(x, a, params)
    jax.block_until_ready(q)
    q_ref = _reference(x, a, params)
    assert q.shape == (B, 1)
    # bf16 MXU operands with f32 accumulation => relaxed tolerance vs pure f32.
    assert jnp.allclose(q, q_ref, atol=2e-2, rtol=2e-2)

    # Exercise the multi-grid-step path (2 tiles, partial tail block, no pad).
    B2 = 300
    kx2, ka2 = jax.random.split(jax.random.PRNGKey(1))
    x2 = jax.random.normal(kx2, (B2, obs_dim), jnp.float32)
    a2 = jax.random.normal(ka2, (B2, act_dim), jnp.float32)
    q2 = soft_q_forward(x2, a2, params)
    jax.block_until_ready(q2)
    q2_ref = _reference(x2, a2, params)
    assert q2.shape == (B2, 1)
    assert jnp.allclose(q2, q2_ref, atol=2e-2, rtol=2e-2)

    print("KERNEL_OK")
</pallas_src>

<mosaic_0001>
module attributes {stable_mosaic.version = 11 : i64} {
  func.func @_softq_kernel(%arg0: i32, %arg1: memref<2x16xf32, #tpu.memory_space<vmem>>, %arg2: memref<2x8xf32, #tpu.memory_space<vmem>>, %arg3: memref<16x256xbf16, #tpu.memory_space<vmem>>, %arg4: memref<8x256xbf16, #tpu.memory_space<vmem>>, %arg5: memref<1x256xf32, #tpu.memory_space<vmem>>, %arg6: memref<256x256xbf16, #tpu.memory_space<vmem>>, %arg7: memref<1x256xf32, #tpu.memory_space<vmem>>, %arg8: memref<1x256xf32, #tpu.memory_space<vmem>>, %arg9: memref<1x1xf32, #tpu.memory_space<smem>>, %arg10: memref<1x2xf32, #tpu.memory_space<vmem>>) attributes {dimension_semantics = [#tpu.dimension_semantics<parallel>], iteration_bounds = array<i64: 1>, scalar_prefetch = 0 : i64, scratch_operands = 0 : i64, tpu.core_type = #tpu.core_type<tc>, window_params = [{transform_indices = @transform_0, window_bounds = array<i64: 2, 16>}, {transform_indices = @transform_1, window_bounds = array<i64: 2, 8>}, {pipeline_mode = #tpu.pipeline_mode<synchronous>, transform_indices = @transform_2, window_bounds = array<i64: 16, 256>}, {pipeline_mode = #tpu.pipeline_mode<synchronous>, transform_indices = @transform_3, window_bounds = array<i64: 8, 256>}, {pipeline_mode = #tpu.pipeline_mode<synchronous>, transform_indices = @transform_4, window_bounds = array<i64: 1, 256>}, {pipeline_mode = #tpu.pipeline_mode<synchronous>, transform_indices = @transform_5, window_bounds = array<i64: 256, 256>}, {pipeline_mode = #tpu.pipeline_mode<synchronous>, transform_indices = @transform_6, window_bounds = array<i64: 1, 256>}, {pipeline_mode = #tpu.pipeline_mode<synchronous>, transform_indices = @transform_7, window_bounds = array<i64: 1, 256>}, {transform_indices = @transform_8, window_bounds = array<i64: 1, 1>}, {transform_indices = @transform_9, window_bounds = array<i64: 1, 2>}]} {
    %c0 = arith.constant 0 : index
    %c0_0 = arith.constant 0 : index
    %0 = vector.load %arg1[%c0, %c0_0] : memref<2x16xf32, #tpu.memory_space<vmem>>, vector<2x16xf32>
    %1 = arith.truncf %0 : vector<2x16xf32> to vector<2x16xbf16>
    %c0_1 = arith.constant 0 : index
    %c0_2 = arith.constant 0 : index
    %2 = vector.load %arg3[%c0_1, %c0_2] : memref<16x256xbf16, #tpu.memory_space<vmem>>, vector<16x256xbf16>
    %cst = arith.constant dense<0.000000e+00> : vector<2x256xf32>
    %3 = tpu.matmul %1, %2, %cst {dimension_numbers = #tpu.dot_dimension_numbers<[1], [0], [0], [1], [0, 0, 1, 1], [], []>} : vector<2x16xbf16>, vector<16x256xbf16>, vector<2x256xf32> -> vector<2x256xf32>
    %c0_3 = arith.constant 0 : index
    %c0_4 = arith.constant 0 : index
    %4 = vector.load %arg2[%c0_3, %c0_4] : memref<2x8xf32, #tpu.memory_space<vmem>>, vector<2x8xf32>
    %5 = arith.truncf %4 : vector<2x8xf32> to vector<2x8xbf16>
    %c0_5 = arith.constant 0 : index
    %c0_6 = arith.constant 0 : index
    %6 = vector.load %arg4[%c0_5, %c0_6] : memref<8x256xbf16, #tpu.memory_space<vmem>>, vector<8x256xbf16>
    %cst_7 = arith.constant dense<0.000000e+00> : vector<2x256xf32>
    %7 = tpu.matmul %5, %6, %cst_7 {dimension_numbers = #tpu.dot_dimension_numbers<[1], [0], [0], [1], [0, 0, 1, 1], [], []>} : vector<2x8xbf16>, vector<8x256xbf16>, vector<2x256xf32> -> vector<2x256xf32>
    %8 = arith.addf %3, %7 : vector<2x256xf32>
    %c0_8 = arith.constant 0 : index
    %c0_9 = arith.constant 0 : index
    %9 = vector.load %arg5[%c0_8, %c0_9] : memref<1x256xf32, #tpu.memory_space<vmem>>, vector<1x256xf32>
    %10 = vector.broadcast %9 : vector<1x256xf32> to vector<2x256xf32>
    %11 = arith.addf %8, %10 : vector<2x256xf32>
    %cst_10 = arith.constant 0.000000e+00 : f32
    %12 = vector.broadcast %cst_10 : f32 to vector<2x256xf32>
    %13 = arith.maximumf %11, %12 : vector<2x256xf32>
    %14 = arith.truncf %13 : vector<2x256xf32> to vector<2x256xbf16>
    %c0_11 = arith.constant 0 : index
    %c0_12 = arith.constant 0 : index
    %15 = vector.load %arg6[%c0_11, %c0_12] : memref<256x256xbf16, #tpu.memory_space<vmem>>, vector<256x256xbf16>
    %cst_13 = arith.constant dense<0.000000e+00> : vector<2x256xf32>
    %16 = tpu.matmul %14, %15, %cst_13 {dimension_numbers = #tpu.dot_dimension_numbers<[1], [0], [0], [1], [0, 0, 1, 1], [], []>} : vector<2x256xbf16>, vector<256x256xbf16>, vector<2x256xf32> -> vector<2x256xf32>
    %c0_14 = arith.constant 0 : index
    %c0_15 = arith.constant 0 : index
    %17 = vector.load %arg7[%c0_14, %c0_15] : memref<1x256xf32, #tpu.memory_space<vmem>>, vector<1x256xf32>
    %18 = vector.broadcast %17 : vector<1x256xf32> to vector<2x256xf32>
    %19 = arith.addf %16, %18 : vector<2x256xf32>
    %cst_16 = arith.constant 0.000000e+00 : f32
    %20 = vector.broadcast %cst_16 : f32 to vector<2x256xf32>
    %21 = arith.maximumf %19, %20 : vector<2x256xf32>
    %c0_17 = arith.constant 0 : index
    %c0_18 = arith.constant 0 : index
    %22 = vector.load %arg8[%c0_17, %c0_18] : memref<1x256xf32, #tpu.memory_space<vmem>>, vector<1x256xf32>
    %cst_19 = arith.constant dense<0.000000e+00> : vector<1x2xf32>
    %23 = tpu.matmul %22, %21, %cst_19 {dimension_numbers = #tpu.dot_dimension_numbers<[1], [1], [0], [0], [0, 0, 1, 0], [], []>} : vector<1x256xf32>, vector<2x256xf32>, vector<1x2xf32> -> vector<1x2xf32>
    %c0_20 = arith.constant 0 : index
    %c0_21 = arith.constant 0 : index
    %24 = memref.load %arg9[%c0_20, %c0_21] : memref<1x1xf32, #tpu.memory_space<smem>>
    %25 = vector.broadcast %24 : f32 to vector<1x2xf32>
    %26 = arith.addf %23, %25 : vector<1x2xf32>
    %c0_22 = arith.constant 0 : index
    %c0_23 = arith.constant 0 : index
    %27 = vector.load %arg10[%c0_22, %c0_23] : memref<1x2xf32, #tpu.memory_space<vmem>>, vector<1x2xf32>
    tpu.vector_store %arg10[%c0_22, %c0_23], %26 {strides = array<i32>} : memref<1x2xf32, #tpu.memory_space<vmem>>, vector<1x2xf32>,
    return
  }
  func.func @transform_0(%arg0: i32) -> (i32, i32) {
    %c0_i32 = arith.constant 0 : i32
    %c0_i32_0 = arith.constant 0 : i32
    return %arg0, %c0_i32 : i32, i32
  }
  func.func @transform_1(%arg0: i32) -> (i32, i32) {
    %c0_i32 = arith.constant 0 : i32
    %c0_i32_0 = arith.constant 0 : i32
    return %arg0, %c0_i32 : i32, i32
  }
  func.func @transform_2(%arg0: i32) -> (i32, i32) {
    %c0_i32 = arith.constant 0 : i32
    %c0_i32_0 = arith.constant 0 : i32
    %c0_i32_1 = arith.constant 0 : i32
    return %c0_i32, %c0_i32_0 : i32, i32
  }
  func.func @transform_3(%arg0: i32) -> (i32, i32) {
    %c0_i32 = arith.constant 0 : i32
    %c0_i32_0 = arith.constant 0 : i32
    %c0_i32_1 = arith.constant 0 : i32
    return %c0_i32, %c0_i32_0 : i32, i32
  }
  func.func @transform_4(%arg0: i32) -> (i32, i32) {
    %c0_i32 = arith.constant 0 : i32
    %c0_i32_0 = arith.constant 0 : i32
    %c0_i32_1 = arith.constant 0 : i32
    return %c0_i32, %c0_i32_0 : i32, i32
  }
  func.func @transform_5(%arg0: i32) -> (i32, i32) {
    %c0_i32 = arith.constant 0 : i32
    %c0_i32_0 = arith.constant 0 : i32
    %c0_i32_1 = arith.constant 0 : i32
    return %c0_i32, %c0_i32_0 : i32, i32
  }
  func.func @transform_6(%arg0: i32) -> (i32, i32) {
    %c0_i32 = arith.constant 0 : i32
    %c0_i32_0 = arith.constant 0 : i32
    %c0_i32_1 = arith.constant 0 : i32
    return %c0_i32, %c0_i32_0 : i32, i32
  }
  func.func @transform_7(%arg0: i32) -> (i32, i32) {
    %c0_i32 = arith.constant 0 : i32
    %c0_i32_0 = arith.constant 0 : i32
    %c0_i32_1 = arith.constant 0 : i32
    return %c0_i32, %c0_i32_0 : i32, i32
  }
  func.func @transform_8(%arg0: i32) -> (i32, i32) {
    %c0_i32 = arith.constant 0 : i32
    %c0_i32_0 = arith.constant 0 : i32
    %c0_i32_1 = arith.constant 0 : i32
    return %c0_i32, %c0_i32_0 : i32, i32
  }
  func.func @transform_9(%arg0: i32) -> (i32, i32) {
    %c0_i32 = arith.constant 0 : i32
    %c0_i32_0 = arith.constant 0 : i32
    return %arg0, %c0_i32 : i32, i32
  }
}

</mosaic_0001>

<llo_original>
// kernel: tpu_custom_call.1
$region0: #{tpu_custom_call.1}
  #allocation0 [shape = 'u32[]', space=smem, size = 0x4, offset = 0x4, fixed_abs, tag = 'smem constant byte address 0x4 - core index']
  #allocation1 [shape = 'u32[144,128]{1,0:T(1,128)}', space=vmem, size = 0x12000, scoped, tag = 'internal scratch']
  #allocation2 [shape = 'f32[1,1]{1,0:T(1,128)S(6)}', space=smem, size = 0x200, scoped, tag = 'scoped memory for tpu_custom_call.1']
  %s0 = inlined_call_operand.vmem [shape: f32[2,16], index: 0, kind: input, shape index: {}]
  %s1 = inlined_call_operand.vmem [shape: f32[2,8], index: 1, kind: input, shape index: {}]
  %s2 = inlined_call_operand.hbm [shape: bf16[16,256], index: 2, kind: input, shape index: {}]
  %s3 = inlined_call_operand.vmem [shape: bf16[8,256], index: 3, kind: input, shape index: {}]
  %s4 = inlined_call_operand.vmem [shape: f32[1,256], index: 4, kind: input, shape index: {}]
  %s5 = inlined_call_operand.hbm [shape: bf16[256,256], index: 5, kind: input, shape index: {}]
  %s6 = inlined_call_operand.vmem [shape: f32[1,256], index: 6, kind: input, shape index: {}]
  %s7 = inlined_call_operand.vmem [shape: f32[1,256], index: 7, kind: input, shape index: {}]
  %s8 = inlined_call_operand.<no memory space> [shape: f32[1,1], index: 8, kind: input, shape index: {}]
  %s9 = inlined_call_operand.hbm [shape: f32[1,2], index: 9, kind: output, shape index: {}]
  %s10 = sld [smem:[#allocation0]]
  $region54: #{tpu_custom_call.1} parent=0
    _
  %s12 = ssub.s32 1, %s10
  %s13 = scalar_select 0, %s12, %s10
  %14 = sst [smem:[#allocation2]] %s8
  $region1: #{tpu_custom_call.1} parent=0
    #allocation3 [shape = 'u8[8192]{0}', space=vmem, size = 0x2000, scoped, tag = 'input window, operand 2, single buffered']
    #allocation4 [shape = 's32[1]{0}', space=sflag, size = 0x4, scoped, tag = 'scoped memory for tpu_custom_call.1']
    #allocation5 [shape = 's32[1]{0}', space=sflag, size = 0x4, scoped, tag = 'scoped memory for tpu_custom_call.1']
    #allocation6 [shape = 'u8[131072]{0}', space=vmem, size = 0x20000, scoped, tag = 'input window, operand 5, single buffered']
    #allocation7 [shape = 's32[1]{0}', space=sflag, size = 0x4, scoped, tag = 'scoped memory for tpu_custom_call.1']
    #allocation8 [shape = 'u8[512]{0}', space=vmem, size = 0x400, scoped, tag = 'output window, operand 0, single buffered']
    %15 = vsyncpa [#allocation4], 0
    %16 = vsyncpa [#allocation7], 0
    %17 = vsyncpa [#allocation5], 0
    // Predicated region
    $region2: #{tpu_custom_call.1} parent=1 // pred_check
      _
    $region3: #{tpu_custom_call.1} parent=1 // pred_check_branch
      %19 = sbr.rel (0) target = $region5
    $region4: #{tpu_custom_call.1} parent=1 // pred_region
      _
    $region5: #{tpu_custom_call.1} parent=1 // pred_fallthru
      _
    // Predicated region
    $region6: #{tpu_custom_call.1} parent=1 // pred_check
      _
    $region7: #{tpu_custom_call.1} parent=1 // pred_check_branch
      %21 = sbr.rel (0) target = $region9
    $region8: #{tpu_custom_call.1} parent=1 // pred_region
      _
    $region9: #{tpu_custom_call.1} parent=1 // pred_fallthru
      _
    // Predicated region
    $region10: #{tpu_custom_call.1} parent=1 // pred_check
      _
    $region11: #{tpu_custom_call.1} parent=1 // pred_check_branch
      %23 = sbr.rel (0) target = $region13
    $region12: #{tpu_custom_call.1} parent=1 // pred_region
      %s25 = ssub.s32 256, 256
      %26 = vsyncadd [#allocation4], %s25
      %s27 = sshll.u32 [#allocation3], 4
      %s28 = int_to_ptr.vmem [resolvable:$true] %s27
      %33 = dma.hbm_to_vmem [thread:$0]  %s2, 256, %s28, [#allocation4], 128, 128, 8
    $region13: #{tpu_custom_call.1} parent=1 // pred_fallthru
      _
    // Predicated region
    $region14: #{tpu_custom_call.1} parent=1 // pred_check
      _
    $region15: #{tpu_custom_call.1} parent=1 // pred_check_branch
      %35 = sbr.rel (0) target = $region17
    $region16: #{tpu_custom_call.1} parent=1 // pred_region
      _
    $region17: #{tpu_custom_call.1} parent=1 // pred_fallthru
      _
    // Predicated region
    $region18: #{tpu_custom_call.1} parent=1 // pred_check
      _
    $region19: #{tpu_custom_call.1} parent=1 // pred_check_branch
      %37 = sbr.rel (0) target = $region21
    $region20: #{tpu_custom_call.1} parent=1 // pred_region
      _
    $region21: #{tpu_custom_call.1} parent=1 // pred_fallthru
      _
    // Predicated region
    $region22: #{tpu_custom_call.1} parent=1 // pred_check
      _
    $region23: #{tpu_custom_call.1} parent=1 // pred_check_branch
      %39 = sbr.rel (0) target = $region25
    $region24: #{tpu_custom_call.1} parent=1 // pred_region
      %s41 = ssub.s32 4096, 4096
      %42 = vsyncadd [#allocation7], %s41
      %s43 = sshll.u32 [#allocation6], 4
      %s44 = int_to_ptr.vmem [resolvable:$true] %s43
      %49 = dma.hbm_to_vmem [thread:$0]  %s5, 4096, %s44, [#allocation7], 128, 128, 8
    $region25: #{tpu_custom_call.1} parent=1 // pred_fallthru
      _
    // Predicated region
    $region26: #{tpu_custom_call.1} parent=1 // pred_check
      _
    $region27: #{tpu_custom_call.1} parent=1 // pred_check_branch
      %51 = sbr.rel (0) target = $region29
    $region28: #{tpu_custom_call.1} parent=1 // pred_region
      _
    $region29: #{tpu_custom_call.1} parent=1 // pred_fallthru
      _
    // Predicated region
    $region30: #{tpu_custom_call.1} parent=1 // pred_check
      _
    $region31: #{tpu_custom_call.1} parent=1 // pred_check_branch
      %53 = sbr.rel (0) target = $region33
    $region32: #{tpu_custom_call.1} parent=1 // pred_region
      _
    $region33: #{tpu_custom_call.1} parent=1 // pred_fallthru
      _
    // Predicated region
    $region34: #{tpu_custom_call.1} parent=1 // pred_check
      _
    $region35: #{tpu_custom_call.1} parent=1 // pred_check_branch
      %55 = sbr.rel (0) target = $region37
    $region36: #{tpu_custom_call.1} parent=1 // pred_region
      _
    $region37: #{tpu_custom_call.1} parent=1 // pred_fallthru
      _
    // Predicated region
    $region38: #{tpu_custom_call.1} parent=1 // pred_check
      _
    $region39: #{tpu_custom_call.1} parent=1 // pred_check_branch
      %57 = sbr.rel (0) target = $region41
    $region40: #{tpu_custom_call.1} parent=1 // pred_region
      %58 = dma.done [#allocation4], 256
    $region41: #{tpu_custom_call.1} parent=1 // pred_fallthru
      _
    // Predicated region
    $region42: #{tpu_custom_call.1} parent=1 // pred_check
      _
    $region43: #{tpu_custom_call.1} parent=1 // pred_check_branch
      %60 = sbr.rel (0) target = $region45
    $region44: #{tpu_custom_call.1} parent=1 // pred_region
      %61 = dma.done [#allocation7], 4096
    $region45: #{tpu_custom_call.1} parent=1 // pred_fallthru
      _
    %v63 = vld [vmem:[%s0] sm:$0x3]
    %v64 = vpack.c.bf16 %v63, %v63
    %v65 = vld [vmem:[#allocation3] sm:$0xff]
    %v66 = vld [vmem:[#allocation3 + $0x8] sm:$0xff]
    %v67 = vld [vmem:[%s1] sm:$0x3]
    %v68 = vpack.c.bf16 %v67, %v67
    %v69 = vld [vmem:[%s3] sm:$0xff]
    %v71 = vunpack.c.l.b16 %v69
    %v72 = vunpack.c.h.b16 %v69
    %v73 = vpack.c.b16 %v71, %v71
    %v74 = vpack.c.b16 %v72, %v72
    %vm75 = vcmask 64512
    %v77 = vsel %vm75, %v68, 0
    %vm79 = vcmask 1043456
    %v81 = vsel %vm79, %v73, 0
    %v84 = vsel %vm79, %v74, 0
    %86 = vmatprep.subr.bf16.mxu0 %v84
    %87 = vmatpush1.bf16.msra.mxu0 %v81
    %88 = vmatprep.subr.bf16.mxu0 0
    %89 = vmatpush1.bf16.msra.mxu0 0
    %90 = vmatprep.subr.bf16.mxu0 0
    %91 = vmatpush1.bf16.msra.mxu0 0
    %92 = vmatprep.subr.bf16.mxu0 0
    %93 = vmatpush1.bf16.msra.mxu0 0
    %94 = vmatprep.subr.bf16.mxu0 0
    %95 = vmatpush1.bf16.msra.mxu0 0
    %96 = vmatprep.subr.bf16.mxu0 0
    %97 = vmatpush1.bf16.msra.mxu0 0
    %98 = vmatprep.subr.bf16.mxu0 0
    %99 = vmatpush1.bf16.msra.mxu0 0
    %100 = vmatprep.subr.bf16.mxu0 0
    %101 = vmatpush1.bf16.msra.mxu0 0
    %102 = vmatprep.subr.bf16.mxu0 0
    %103 = vmatpush1.bf16.msra.mxu0 0
    %104 = vmatprep.subr.bf16.mxu0 0
    %105 = vmatpush1.bf16.msra.mxu0 0
    %106 = vmatprep.subr.bf16.mxu0 0
    %107 = vmatpush1.bf16.msra.mxu0 0
    %108 = vmatprep.subr.bf16.mxu0 0
    %109 = vmatpush1.bf16.msra.mxu0 0
    %110 = vmatprep.subr.bf16.mxu0 0
    %111 = vmatpush1.bf16.msra.mxu0 0
    %112 = vmatprep.subr.bf16.mxu0 0
    %113 = vmatpush1.bf16.msra.mxu0 0
    %114 = vmatprep.subr.bf16.mxu0 0
    %115 = vmatpush1.bf16.msra.mxu0 0
    %116 = vmatprep.subr.bf16.mxu0 0
    %117 = vmatpush1.bf16.msra.mxu0 0
    %118 = vmatprep.mubr.bf16.mxu0 0
    %119 = vmatmul.mubr.bf16.gmra.mrb[0].mxu0 %v77
    %v120 = vpop.f32.mrb[0].mxu0
    %v121 = vadd.f32 0.0, %v120
    %v122 = vpop.f32.mrb[0].mxu0
    %v123 = vadd.f32 0.0, %v122
    %v124 = vpop.f32.mrb[0].mxu0
    %v125 = vpop.f32.mrb[0].mxu0
    %126 = vdwg.mxu0
    %v129 = vunpack.c.l.b16 %v65
    %v130 = vunpack.c.h.b16 %v65
    %v131 = vunpack.c.l.b16 %v66
    %v132 = vunpack.c.h.b16 %v66
    %v133 = vpack.c.b16 %v131, %v129
    %v134 = vpack.c.b16 %v132, %v130
    %vm137 = vcmask 130048
    %v139 = vsel %vm137, %v64, 0
    %141 = vmatprep.subr.bf16.mxu0 %v134
    %142 = vmatpush1.bf16.msra.mxu0 %v133
    %143 = vmatprep.subr.bf16.mxu0 0
    %144 = vmatpush1.bf16.msra.mxu0 0
    %145 = vmatprep.subr.bf16.mxu0 0
    %146 = vmatpush1.bf16.msra.mxu0 0
    %147 = vmatprep.subr.bf16.mxu0 0
    %148 = vmatpush1.bf16.msra.mxu0 0
    %149 = vmatprep.subr.bf16.mxu0 0
    %150 = vmatpush1.bf16.msra.mxu0 0
    %151 = vmatprep.subr.bf16.mxu0 0
    %152 = vmatpush1.bf16.msra.mxu0 0
    %153 = vmatprep.subr.bf16.mxu0 0
    %154 = vmatpush1.bf16.msra.mxu0 0
    %155 = vmatprep.subr.bf16.mxu0 0
    %156 = vmatpush1.bf16.msra.mxu0 0
    %157 = vmatprep.subr.bf16.mxu0 0
    %158 = vmatpush1.bf16.msra.mxu0 0
    %159 = vmatprep.subr.bf16.mxu0 0
    %160 = vmatpush1.bf16.msra.mxu0 0
    %161 = vmatprep.subr.bf16.mxu0 0
    %162 = vmatpush1.bf16.msra.mxu0 0
    %163 = vmatprep.subr.bf16.mxu0 0
    %164 = vmatpush1.bf16.msra.mxu0 0
    %165 = vmatprep.subr.bf16.mxu0 0
    %166 = vmatpush1.bf16.msra.mxu0 0
    %167 = vmatprep.subr.bf16.mxu0 0
    %168 = vmatpush1.bf16.msra.mxu0 0
    %169 = vmatprep.subr.bf16.mxu0 0
    %170 = vmatpush1.bf16.msra.mxu0 0
    %171 = vmatprep.subr.bf16.mxu0 0
    %172 = vmatpush1.bf16.msra.mxu0 0
    %173 = vmatprep.mubr.bf16.mxu0 0
    %174 = vmatmul.mubr.bf16.gmra.mrb[0].mxu0 %v139
    %v175 = vpop.f32.mrb[0].mxu0
    %v176 = vadd.f32 %v121, %v175
    %v177 = vpop.f32.mrb[0].mxu0
    %v178 = vadd.f32 %v123, %v177
    %v179 = vpop.f32.mrb[0].mxu0
    %v180 = vpop.f32.mrb[0].mxu0
    %181 = vdwg.mxu0
    %v182 = vld [vmem:[%s4] sm:$0x3]
    %v184 = vlaneseq
    %v185 = vshrl.u32 %v184, 7
    %v186 = vsub.s32 0, %v185
    %v187 = vrot.slane %v182, %v186
    %v188 = vlaneseq
    %v189 = vshrl.u32 %v188, 7
    %v190 = vsub.s32 1, %v189
    %v191 = vrot.slane %v182, %v190
    %v194 = vadd.f32 %v176, %v187
    %v195 = vadd.f32 %v178, %v191
    %v196 = vmax.f32 %v194, 0.0
    %v197 = vmax.f32 %v195, 0.0
    %v198 = vpack.c.bf16 %v196, %v196
    %v199 = vpack.c.bf16 %v197, %v197
    %v200 = vld [vmem:[#allocation6] sm:$0xff]
    %v201 = vld [vmem:[#allocation6 + $0x8] sm:$0xff]
    %v202 = vld [vmem:[#allocation6 + $0x10] sm:$0xff]
    %v203 = vld [vmem:[#allocation6 + $0x18] sm:$0xff]
    %v204 = vld [vmem:[#allocation6 + $0x20] sm:$0xff]
    %v205 = vld [vmem:[#allocation6 + $0x28] sm:$0xff]
    %v206 = vld [vmem:[#allocation6 + $0x30] sm:$0xff]
    %v207 = vld [vmem:[#allocation6 + $0x38] sm:$0xff]
    %v208 = vld [vmem:[#allocation6 + $0x40] sm:$0xff]
    %v209 = vld [vmem:[#allocation6 + $0x48] sm:$0xff]
    %v210 = vld [vmem:[#allocation6 + $0x50] sm:$0xff]
    %v211 = vld [vmem:[#allocation6 + $0x58] sm:$0xff]
    %v212 = vld [vmem:[#allocation6 + $0x60] sm:$0xff]
    %v213 = vld [vmem:[#allocation6 + $0x68] sm:$0xff]
    %v214 = vld [vmem:[#allocation6 + $0x70] sm:$0xff]
    %v215 = vld [vmem:[#allocation6 + $0x78] sm:$0xff]
    %v216 = vld [vmem:[#allocation6 + $0x80] sm:$0xff]
    %v217 = vld [vmem:[#allocation6 + $0x88] sm:$0xff]
    %v218 = vld [vmem:[#allocation6 + $0x90] sm:$0xff]
    %v219 = vld [vmem:[#allocation6 + $0x98] sm:$0xff]
    %v220 = vld [vmem:[#allocation6 + $0xa0] sm:$0xff]
    %v221 = vld [vmem:[#allocation6 + $0xa8] sm:$0xff]
    %v222 = vld [vmem:[#allocation6 + $0xb0] sm:$0xff]
    %v223 = vld [vmem:[#allocation6 + $0xb8] sm:$0xff]
    %v224 = vld [vmem:[#allocation6 + $0xc0] sm:$0xff]
    %v225 = vld [vmem:[#allocation6 + $0xc8] sm:$0xff]
    %v226 = vld [vmem:[#allocation6 + $0xd0] sm:$0xff]
    %v227 = vld [vmem:[#allocation6 + $0xd8] sm:$0xff]
    %v228 = vld [vmem:[#allocation6 + $0xe0] sm:$0xff]
    %v229 = vld [vmem:[#allocation6 + $0xe8] sm:$0xff]
    %v230 = vld [vmem:[#allocation6 + $0xf0] sm:$0xff]
    %v231 = vld [vmem:[#allocation6 + $0xf8] sm:$0xff]
    %v232 = vld [vmem:[%s6] sm:$0x3]
    %v234 = vlaneseq
    %v235 = vshrl.u32 %v234, 7
    %v236 = vsub.s32 0, %v235
    %v237 = vrot.slane %v232, %v236
    %v238 = vlaneseq
    %v239 = vshrl.u32 %v238, 7
    %v240 = vsub.s32 1, %v239
    %v241 = vrot.slane %v232, %v240
    %v276 = vunpack.c.l.b16 %v200
    %v277 = vunpack.c.h.b16 %v200
    %v278 = vunpack.c.l.b16 %v201
    %v279 = vunpack.c.h.b16 %v201
    %v280 = vunpack.c.l.b16 %v202
    %v281 = vunpack.c.h.b16 %v202
    %v282 = vunpack.c.l.b16 %v203
    %v283 = vunpack.c.h.b16 %v203
    %v284 = vunpack.c.l.b16 %v204
    %v285 = vunpack.c.h.b16 %v204
    %v286 = vunpack.c.l.b16 %v205
    %v287 = vunpack.c.h.b16 %v205
    %v288 = vunpack.c.l.b16 %v206
    %v289 = vunpack.c.h.b16 %v206
    %v290 = vunpack.c.l.b16 %v207
    %v291 = vunpack.c.h.b16 %v207
    %v292 = vunpack.c.l.b16 %v208
    %v293 = vunpack.c.h.b16 %v208
    %v294 = vunpack.c.l.b16 %v209
    %v295 = vunpack.c.h.b16 %v209
    %v296 = vunpack.c.l.b16 %v210
    %v297 = vunpack.c.h.b16 %v210
    %v298 = vunpack.c.l.b16 %v211
    %v299 = vunpack.c.h.b16 %v211
    %v300 = vunpack.c.l.b16 %v212
    %v301 = vunpack.c.h.b16 %v212
    %v302 = vunpack.c.l.b16 %v213
    %v303 = vunpack.c.h.b16 %v213
    %v304 = vunpack.c.l.b16 %v214
    %v305 = vunpack.c.h.b16 %v214
    %v306 = vunpack.c.l.b16 %v215
    %v307 = vunpack.c.h.b16 %v215
    %v308 = vunpack.c.l.b16 %v216
    %v309 = vunpack.c.h.b16 %v216
    %v310 = vunpack.c.l.b16 %v217
    %v311 = vunpack.c.h.b16 %v217
    %v312 = vunpack.c.l.b16 %v218
    %v313 = vunpack.c.h.b16 %v218
    %v314 = vunpack.c.l.b16 %v219
    %v315 = vunpack.c.h.b16 %v219
    %v316 = vunpack.c.l.b16 %v220
    %v317 = vunpack.c.h.b16 %v220
    %v318 = vunpack.c.l.b16 %v221
    %v319 = vunpack.c.h.b16 %v221
    %v320 = vunpack.c.l.b16 %v222
    %v321 = vunpack.c.h.b16 %v222
    %v322 = vunpack.c.l.b16 %v223
    %v323 = vunpack.c.h.b16 %v223
    %v324 = vunpack.c.l.b16 %v224
    %v325 = vunpack.c.h.b16 %v224
    %v326 = vunpack.c.l.b16 %v225
    %v327 = vunpack.c.h.b16 %v225
    %v328 = vunpack.c.l.b16 %v226
    %v329 = vunpack.c.h.b16 %v226
    %v330 = vunpack.c.l.b16 %v227
    %v331 = vunpack.c.h.b16 %v227
    %v332 = vunpack.c.l.b16 %v228
    %v333 = vunpack.c.h.b16 %v228
    %v334 = vunpack.c.l.b16 %v229
    %v335 = vunpack.c.h.b16 %v229
    %v336 = vunpack.c.l.b16 %v230
    %v337 = vunpack.c.h.b16 %v230
    %v338 = vunpack.c.l.b16 %v231
    %v339 = vunpack.c.h.b16 %v231
    %v340 = vpack.c.b16 %v278, %v276
    %v341 = vpack.c.b16 %v279, %v277
    %v342 = vpack.c.b16 %v282, %v280
    %v343 = vpack.c.b16 %v283, %v281
    %v344 = vpack.c.b16 %v286, %v284
    %v345 = vpack.c.b16 %v287, %v285
    %v346 = vpack.c.b16 %v290, %v288
    %v347 = vpack.c.b16 %v291, %v289
    %v348 = vpack.c.b16 %v294, %v292
    %v349 = vpack.c.b16 %v295, %v293
    %v350 = vpack.c.b16 %v298, %v296
    %v351 = vpack.c.b16 %v299, %v297
    %v352 = vpack.c.b16 %v302, %v300
    %v353 = vpack.c.b16 %v303, %v301
    %v354 = vpack.c.b16 %v306, %v304
    %v355 = vpack.c.b16 %v307, %v305
    %v356 = vpack.c.b16 %v310, %v308
    %v357 = vpack.c.b16 %v311, %v309
    %v358 = vpack.c.b16 %v314, %v312
    %v359 = vpack.c.b16 %v315, %v313
    %v360 = vpack.c.b16 %v318, %v316
    %v361 = vpack.c.b16 %v319, %v317
    %v362 = vpack.c.b16 %v322, %v320
    %v363 = vpack.c.b16 %v323, %v321
    %v364 = vpack.c.b16 %v326, %v324
    %v365 = vpack.c.b16 %v327, %v325
    %v366 = vpack.c.b16 %v330, %v328
    %v367 = vpack.c.b16 %v331, %v329
    %v368 = vpack.c.b16 %v334, %v332
    %v369 = vpack.c.b16 %v335, %v333
    %v370 = vpack.c.b16 %v338, %v336
    %v371 = vpack.c.b16 %v339, %v337
    %404 = vmatprep.subr.bf16.mxu0 %v341
    %405 = vmatpush1.bf16.msra.mxu0 %v340
    %406 = vmatprep.subr.bf16.mxu0 %v343
    %407 = vmatpush1.bf16.msra.mxu0 %v342
    %408 = vmatprep.subr.bf16.mxu0 %v345
    %409 = vmatpush1.bf16.msra.mxu0 %v344
    %410 = vmatprep.subr.bf16.mxu0 %v347
    %411 = vmatpush1.bf16.msra.mxu0 %v346
    %412 = vmatprep.subr.bf16.mxu0 %v349
    %413 = vmatpush1.bf16.msra.mxu0 %v348
    %414 = vmatprep.subr.bf16.mxu0 %v351
    %415 = vmatpush1.bf16.msra.mxu0 %v350
    %416 = vmatprep.subr.bf16.mxu0 %v353
    %417 = vmatpush1.bf16.msra.mxu0 %v352
    %418 = vmatprep.subr.bf16.mxu0 %v355
    %419 = vmatpush1.bf16.msra.mxu0 %v354
    %420 = vmatprep.subr.bf16.mxu0 %v357
    %421 = vmatpush1.bf16.msra.mxu0 %v356
    %422 = vmatprep.subr.bf16.mxu0 %v359
    %423 = vmatpush1.bf16.msra.mxu0 %v358
    %424 = vmatprep.subr.bf16.mxu0 %v361
    %425 = vmatpush1.bf16.msra.mxu0 %v360
    %426 = vmatprep.subr.bf16.mxu0 %v363
    %427 = vmatpush1.bf16.msra.mxu0 %v362
    %428 = vmatprep.subr.bf16.mxu0 %v365
    %429 = vmatpush1.bf16.msra.mxu0 %v364
    %430 = vmatprep.subr.bf16.mxu0 %v367
    %431 = vmatpush1.bf16.msra.mxu0 %v366
    %432 = vmatprep.subr.bf16.mxu0 %v369
    %433 = vmatpush1.bf16.msra.mxu0 %v368
    %434 = vmatprep.subr.bf16.mxu0 %v371
    %435 = vmatpush1.bf16.msra.mxu0 %v370
    %436 = vmatprep.mubr.bf16.mxu0 %v199
    %437 = vmatmul.mubr.bf16.gmra.mrb[0].mxu0 %v198
    %v438 = vpop.f32.mrb[0].mxu0
    %v439 = vadd.f32 %v237, %v438
    %v440 = vpop.f32.mrb[0].mxu0
    %v441 = vadd.f32 %v241, %v440
    %v442 = vpop.f32.mrb[0].mxu0
    %v443 = vpop.f32.mrb[0].mxu0
    %444 = vdwg.mxu0
    %v445 = vmax.f32 %v439, 0.0
    %v446 = vmax.f32 %v441, 0.0
    %v447 = vld [vmem:[%s7] sm:$0x3]
    %s448 = sld [smem:[#allocation2]]
    %v449 = vstv %s448
    %v451 = vlaneseq
    %v452 = vshrl.u32 %v451, 7
    %v453 = vsub.s32 0, %v452
    %v454 = vrot.slane %v447, %v453
    %v455 = vlaneseq
    %v456 = vshrl.u32 %v455, 7
    %v457 = vsub.s32 1, %v456
    %v458 = vrot.slane %v447, %v457
    %461 = vmatprep.subr.mxu0 %v446
    %462 = vmatpush1.xpose.msra.mxu0 %v445
    %463 = vmatprep.subr.mxu0 0.0
    %464 = vmatpush1.xpose.msra.mxu0 0.0
    %465 = vmatprep.subr.mxu0 0.0
    %466 = vmatpush1.xpose.msra.mxu0 0.0
    %467 = vmatprep.subr.mxu0 0.0
    %468 = vmatpush1.xpose.msra.mxu0 0.0
    %469 = vmatprep.subr.mxu0 0.0
    %470 = vmatpush1.xpose.msra.mxu0 0.0
    %471 = vmatprep.subr.mxu0 0.0
    %472 = vmatpush1.xpose.msra.mxu0 0.0
    %473 = vmatprep.subr.mxu0 0.0
    %474 = vmatpush1.xpose.msra.mxu0 0.0
    %475 = vmatprep.subr.mxu0 0.0
    %476 = vmatpush1.xpose.msra.mxu0 0.0
    %477 = vmatprep.subr.mxu0 0.0
    %478 = vmatpush1.xpose.msra.mxu0 0.0
    %479 = vmatprep.subr.mxu0 0.0
    %480 = vmatpush1.xpose.msra.mxu0 0.0
    %481 = vmatprep.subr.mxu0 0.0
    %482 = vmatpush1.xpose.msra.mxu0 0.0
    %483 = vmatprep.subr.mxu0 0.0
    %484 = vmatpush1.xpose.msra.mxu0 0.0
    %485 = vmatprep.subr.mxu0 0.0
    %486 = vmatpush1.xpose.msra.mxu0 0.0
    %487 = vmatprep.subr.mxu0 0.0
    %488 = vmatpush1.xpose.msra.mxu0 0.0
    %489 = vmatprep.subr.mxu0 0.0
    %490 = vmatpush1.xpose.msra.mxu0 0.0
    %491 = vmatprep.subr.mxu0 0.0
    %492 = vmatpush1.xpose.msra.mxu0 0.0
    %493 = vmatprep.subr.mxu0 0.0
    %494 = vmatpush1.xpose.msra.mxu0 0.0
    %495 = vmatprep.subr.mxu0 0.0
    %496 = vmatpush1.xpose.msra.mxu0 0.0
    %497 = vmatprep.subr.mxu0 0.0
    %498 = vmatpush1.xpose.msra.mxu0 0.0
    %499 = vmatprep.subr.mxu0 0.0
    %500 = vmatpush1.xpose.msra.mxu0 0.0
    %501 = vmatprep.subr.mxu0 0.0
    %502 = vmatpush1.xpose.msra.mxu0 0.0
    %503 = vmatprep.subr.mxu0 0.0
    %504 = vmatpush1.xpose.msra.mxu0 0.0
    %505 = vmatprep.subr.mxu0 0.0
    %506 = vmatpush1.xpose.msra.mxu0 0.0
    %507 = vmatprep.subr.mxu0 0.0
    %508 = vmatpush1.xpose.msra.mxu0 0.0
    %509 = vmatprep.subr.mxu0 0.0
    %510 = vmatpush1.xpose.msra.mxu0 0.0
    %511 = vmatprep.subr.mxu0 0.0
    %512 = vmatpush1.xpose.msra.mxu0 0.0
    %513 = vmatprep.subr.mxu0 0.0
    %514 = vmatpush1.xpose.msra.mxu0 0.0
    %515 = vmatprep.subr.mxu0 0.0
    %516 = vmatpush1.xpose.msra.mxu0 0.0
    %517 = vmatprep.subr.mxu0 0.0
    %518 = vmatpush1.xpose.msra.mxu0 0.0
    %519 = vmatprep.subr.mxu0 0.0
    %520 = vmatpush1.xpose.msra.mxu0 0.0
    %521 = vmatprep.subr.mxu0 0.0
    %522 = vmatpush1.xpose.msra.mxu0 0.0
    %523 = vmatprep.subr.mxu0 0.0
    %524 = vmatpush1.xpose.msra.mxu0 0.0
    %525 = vmatprep.mubr.f32.mxu0 %v458
    %526 = vmatmul.mubr.f32.gmra.mrb[0].mxu0 %v454
    %v527 = vpop.f32.mrb[0].mxu0
    %v528 = vadd.f32 %v449, %v527
    %v529 = vpop.f32.mrb[0].mxu0
    %530 = vdwg.mxu0
    %vm531 = vcmask 8192
    %532 = vst.msk [vmem:[#allocation8] sm:$0x1] %vm531, %v528
    // Predicated region
    $region46: #{tpu_custom_call.1} parent=1 // pred_check
      _
    $region47: #{tpu_custom_call.1} parent=1 // pred_check_branch
      %534 = sbr.rel (0) target = $region49
    $region48: #{tpu_custom_call.1} parent=1 // pred_region
      %s536 = ssub.s32 16, 16
      %537 = vsyncadd [#allocation5], %s536
      %s539 = sshll.u32 [#allocation8], 4
      %s540 = int_to_ptr.vmem [resolvable:$true] %s539
      %542 = dma.vmem_to_hbm [thread:$0]  %s540, 16, %s9, [#allocation5]
    $region49: #{tpu_custom_call.1} parent=1 // pred_fallthru
      _
    // Predicated region
    $region50: #{tpu_custom_call.1} parent=1 // pred_check
      _
    $region51: #{tpu_custom_call.1} parent=1 // pred_check_branch
      %544 = sbr.rel (0) target = $region53
    $region52: #{tpu_custom_call.1} parent=1 // pred_region
      %545 = dma.done [#allocation5], 16
    $region53: #{tpu_custom_call.1} parent=1 // pred_fallthru
      _
    %546 = vsyncpa [#allocation4], 1
    %547 = vsyncpa [#allocation7], 1
    %548 = vsyncpa [#allocation5], 1

</llo_original>
